<compile_context>
chip_gen: v5e
topology: v5e:2x2
jax: 0.10.0
libtpu: 0.0.40
codegen_flags: <defaults>
</compile_context>

<pallas_src>
import jax
import jax.numpy as jnp
from jax.experimental import pallas as pl
from jax.experimental.pallas import tpu as pltpu

CIN, COUT = 3, 5
H, W = 3, 1                  # repaired x spatial size (matches the constant image)
HP, WP = H + 2, W + 2        # conv(padding=1) output spatial size
R = HP * WP                  # 15 flattened padded-spatial positions
LANES = 128                  # lane-dense output width; sliced back to R in wrapper
PCOLS = 2 * CIN + 2          # packed slab columns: w1 | w2 | b1 | b2  (= 8)

# torch.tensor([[0.1,0.1,0.1],[-0.1,-0.1,-0.1],[-0.1,-0.1,-0.1]]) read as (C, H)
CONST_CH = ((0.1, 0.1, 0.1), (-0.1, -0.1, -0.1), (-0.1, -0.1, -0.1))


def fused_conv_add_kernel(p_ref, o_ref):
    """out[co, r] = sum_c w1[co,c]*xpad[c,r] + b1[co] + sum_c w2[co,c]*cpad[c,r] + b2[co].

    p_ref: (8, 8) f32 packed slab:
        rows 0..4 : [ w1 (5,3) | w2 (5,3) | b1 (5,1) | b2 (5,1) ]
        rows 5..7 : [ x  (3,3) | zeros    ]        (x as (channel, height); W == 1)
    o_ref: (COUT, LANES) f32, lane-dense; lanes >= R hold b1+b2 and are sliced off.
    """
    w1 = p_ref[0:COUT, 0:CIN]                                    # (5, 3)
    w2 = p_ref[0:COUT, CIN:2 * CIN]                              # (5, 3)
    b12 = (p_ref[0:COUT, 2 * CIN:2 * CIN + 1]
           + p_ref[0:COUT, 2 * CIN + 1:2 * CIN + 2])             # (5, 1) = b1 + b2

    lanes = jax.lax.broadcasted_iota(jnp.int32, (1, LANES), 1)   # (1, 128)

    # Both conv branches contribute their bias at every padded output position.
    acc = jnp.broadcast_to(b12, (COUT, LANES))                   # (5, 128)

    # Static unroll over the 3 interior rows of the padded (5, 3) spatial grid.
    for h in range(H):
        # One-hot lane mask for padded flat index r = (h+1)*WP + 1.
        m = (lanes == (WP * (h + 1) + 1)).astype(jnp.float32)    # (1, 128)
        # v1 branch: scatter x[:, h] into its padded lane and MAC over channels (VPU).
        xcol = p_ref[COUT:COUT + CIN, h:h + 1] * m               # (3, 128)
        for c in range(CIN):
            acc = acc + w1[:, c:c + 1] * xcol[c:c + 1, :]
        # v2 branch: constant-image values are Python scalars -> fold into one (5,1) coeff.
        ccoef = sum(CONST_CH[c][h] * w2[:, c:c + 1] for c in range(CIN))  # (5, 1)
        acc = acc + ccoef * m

    o_ref[...] = acc


@jax.jit
def model_forward(x, params):
    """x: (1, 3, 3, 1) float32 NCHW. Returns (1, 5, 5, 3) NCHW."""
    (w1, b1), (w2, b2) = params
    n, cin, h, w = x.shape
    assert n == 1 and cin == CIN and h == H and w == W, \
        "repaired semantics require x of shape (1, 3, 3, 1)"

    # Pack everything the kernel needs into one tiny (8, 8) slab -> one input DMA.
    w1m = w1.reshape(COUT, CIN).astype(jnp.float32)
    w2m = w2.reshape(COUT, CIN).astype(jnp.float32)
    prow = jnp.concatenate(
        [w1m, w2m,
         b1.reshape(COUT, 1).astype(jnp.float32),
         b2.reshape(COUT, 1).astype(jnp.float32)], axis=1)        # (5, 8)
    xrow = jnp.pad(x.reshape(CIN, H).astype(jnp.float32),
                   ((0, 0), (0, PCOLS - H)))                      # (3, 8)
    packed = jnp.concatenate([prow, xrow], axis=0)                # (8, 8)

    out_rows = pl.pallas_call(
        fused_conv_add_kernel,
        out_shape=jax.ShapeDtypeStruct((COUT, LANES), jnp.float32),
        in_specs=[pl.BlockSpec(memory_space=pltpu.MemorySpace.VMEM)],
        out_specs=pl.BlockSpec(memory_space=pltpu.MemorySpace.VMEM),
    )(packed)

    # (COUT, R) is already channel-major NCHW order: drop lane padding, reshape.
    return out_rows[:, :R].reshape(1, COUT, HP, WP)


def _reference(x, params):
    """Pure-JAX reference of the same (repaired) semantics."""
    (w1, b1), (w2, b2) = params
    const = jnp.array(
        [[0.1, 0.1, 0.1], [-0.1, -0.1, -0.1], [-0.1, -0.1, -0.1]], jnp.float32
    ).reshape(1, CIN, 3, 1)

    def conv1x1_pad1(inp, w, b):
        xp = jnp.pad(inp, ((0, 0), (0, 0), (1, 1), (1, 1)))
        return jnp.einsum(
            "ncij,oc->noij", xp, w.reshape(w.shape[0], w.shape[1])
        ) + b.reshape(1, -1, 1, 1)

    return conv1x1_pad1(x, w1, b1) + conv1x1_pad1(const, w2, b2)


def init_params(key):
    """Deterministic Conv2d(3, 5, 1) parameter init (PyTorch-style uniform bound)."""
    bound = 1.0 / jnp.sqrt(jnp.float32(CIN))  # fan_in = cin * 1 * 1
    ks = jax.random.split(key, 4)
    w1 = jax.random.uniform(ks[0], (COUT, CIN, 1, 1), jnp.float32, -bound, bound)
    b1 = jax.random.uniform(ks[1], (COUT,), jnp.float32, -bound, bound)
    w2 = jax.random.uniform(ks[2], (COUT, CIN, 1, 1), jnp.float32, -bound, bound)
    b2 = jax.random.uniform(ks[3], (COUT,), jnp.float32, -bound, bound)
    return (w1, b1), (w2, b2)


if __name__ == "__main__":
    key = jax.random.PRNGKey(0)
    pkey, xkey = jax.random.split(key)
    params = init_params(pkey)

    # NCHW input with Cin=3 and spatial (3, 1) so v1 (1,5,5,3) + v2 (1,5,5,3) is valid.
    x = jax.random.normal(xkey, (1, CIN, H, W), jnp.float32)

    out = model_forward(x, params)
    out = jax.block_until_ready(out)

    ref = _reference(x, params)
    assert out.shape == (1, COUT, HP, WP), out.shape
    assert jnp.allclose(out, ref, atol=1e-5, rtol=1e-5), "mismatch vs JAX reference"

    print("KERNEL_OK")
</pallas_src>

<mosaic_0001>
module attributes {stable_mosaic.version = 11 : i64} {
  func.func @fused_conv_add_kernel(%arg0: memref<8x8xf32, #tpu.memory_space<vmem>>, %arg1: memref<5x128xf32, #tpu.memory_space<vmem>>) attributes {dimension_semantics = [], scalar_prefetch = 0 : i64, scratch_operands = 0 : i64, tpu.core_type = #tpu.core_type<tc>} {
    %c0 = arith.constant 0 : index
    %c0_0 = arith.constant 0 : index
    %0 = vector.load %arg0[%c0, %c0_0] : memref<8x8xf32, #tpu.memory_space<vmem>>, vector<5x3xf32>
    %c0_1 = arith.constant 0 : index
    %c3 = arith.constant 3 : index
    %1 = vector.load %arg0[%c0_1, %c3] : memref<8x8xf32, #tpu.memory_space<vmem>>, vector<5x3xf32>
    %c0_2 = arith.constant 0 : index
    %c6 = arith.constant 6 : index
    %2 = vector.load %arg0[%c0_2, %c6] : memref<8x8xf32, #tpu.memory_space<vmem>>, vector<5x1xf32>
    %c0_3 = arith.constant 0 : index
    %c7 = arith.constant 7 : index
    %3 = vector.load %arg0[%c0_3, %c7] : memref<8x8xf32, #tpu.memory_space<vmem>>, vector<5x1xf32>
    %4 = arith.addf %2, %3 : vector<5x1xf32>
    %5 = tpu.iota {dimensions = array<i32: 1>} : vector<1x128xi32>
    %6 = vector.shape_cast %4 : vector<5x1xf32> to vector<5x1xf32>
    %7 = vector.broadcast %6 : vector<5x1xf32> to vector<5x128xf32>
    %c4_i32 = arith.constant 4 : i32
    %8 = vector.broadcast %c4_i32 : i32 to vector<1x128xi32>
    %9 = arith.cmpi eq, %5, %8 : vector<1x128xi32>
    %10 = arith.extui %9 : vector<1x128xi1> to vector<1x128xi32>
    %11 = arith.sitofp %10 : vector<1x128xi32> to vector<1x128xf32>
    %c5 = arith.constant 5 : index
    %c0_4 = arith.constant 0 : index
    %12 = vector.load %arg0[%c5, %c0_4] : memref<8x8xf32, #tpu.memory_space<vmem>>, vector<3x1xf32>
    %13 = vector.broadcast %12 : vector<3x1xf32> to vector<3x128xf32>
    %14 = vector.broadcast %11 : vector<1x128xf32> to vector<3x128xf32>
    %15 = arith.mulf %13, %14 : vector<3x128xf32>
    %16 = vector.extract_strided_slice %0 {offsets = [0, 0], sizes = [5, 1], strides = [1, 1]} : vector<5x3xf32> to vector<5x1xf32>
    %17 = vector.extract_strided_slice %15 {offsets = [0, 0], sizes = [1, 128], strides = [1, 1]} : vector<3x128xf32> to vector<1x128xf32>
    %18 = vector.broadcast %16 : vector<5x1xf32> to vector<5x128xf32>
    %19 = vector.broadcast %17 : vector<1x128xf32> to vector<5x128xf32>
    %20 = arith.mulf %18, %19 : vector<5x128xf32>
    %21 = arith.addf %7, %20 : vector<5x128xf32>
    %22 = vector.extract_strided_slice %0 {offsets = [0, 1], sizes = [5, 1], strides = [1, 1]} : vector<5x3xf32> to vector<5x1xf32>
    %23 = vector.extract_strided_slice %15 {offsets = [1, 0], sizes = [1, 128], strides = [1, 1]} : vector<3x128xf32> to vector<1x128xf32>
    %24 = vector.broadcast %22 : vector<5x1xf32> to vector<5x128xf32>
    %25 = vector.broadcast %23 : vector<1x128xf32> to vector<5x128xf32>
    %26 = arith.mulf %24, %25 : vector<5x128xf32>
    %27 = arith.addf %21, %26 : vector<5x128xf32>
    %28 = vector.extract_strided_slice %0 {offsets = [0, 2], sizes = [5, 1], strides = [1, 1]} : vector<5x3xf32> to vector<5x1xf32>
    %29 = vector.extract_strided_slice %15 {offsets = [2, 0], sizes = [1, 128], strides = [1, 1]} : vector<3x128xf32> to vector<1x128xf32>
    %30 = vector.broadcast %28 : vector<5x1xf32> to vector<5x128xf32>
    %31 = vector.broadcast %29 : vector<1x128xf32> to vector<5x128xf32>
    %32 = arith.mulf %30, %31 : vector<5x128xf32>
    %33 = arith.addf %27, %32 : vector<5x128xf32>
    %34 = vector.extract_strided_slice %1 {offsets = [0, 0], sizes = [5, 1], strides = [1, 1]} : vector<5x3xf32> to vector<5x1xf32>
    %cst = arith.constant 1.000000e-01 : f32
    %35 = vector.broadcast %cst : f32 to vector<5x1xf32>
    %36 = arith.mulf %35, %34 : vector<5x1xf32>
    %cst_5 = arith.constant 0.000000e+00 : f32
    %37 = vector.broadcast %cst_5 : f32 to vector<5x1xf32>
    %38 = arith.addf %37, %36 : vector<5x1xf32>
    %39 = vector.extract_strided_slice %1 {offsets = [0, 1], sizes = [5, 1], strides = [1, 1]} : vector<5x3xf32> to vector<5x1xf32>
    %cst_6 = arith.constant -1.000000e-01 : f32
    %40 = vector.broadcast %cst_6 : f32 to vector<5x1xf32>
    %41 = arith.mulf %40, %39 : vector<5x1xf32>
    %42 = arith.addf %38, %41 : vector<5x1xf32>
    %43 = vector.extract_strided_slice %1 {offsets = [0, 2], sizes = [5, 1], strides = [1, 1]} : vector<5x3xf32> to vector<5x1xf32>
    %cst_7 = arith.constant -1.000000e-01 : f32
    %44 = vector.broadcast %cst_7 : f32 to vector<5x1xf32>
    %45 = arith.mulf %44, %43 : vector<5x1xf32>
    %46 = arith.addf %42, %45 : vector<5x1xf32>
    %47 = vector.broadcast %46 : vector<5x1xf32> to vector<5x128xf32>
    %48 = vector.broadcast %11 : vector<1x128xf32> to vector<5x128xf32>
    %49 = arith.mulf %47, %48 : vector<5x128xf32>
    %50 = arith.addf %33, %49 : vector<5x128xf32>
    %c7_i32 = arith.constant 7 : i32
    %51 = vector.broadcast %c7_i32 : i32 to vector<1x128xi32>
    %52 = arith.cmpi eq, %5, %51 : vector<1x128xi32>
    %53 = arith.extui %52 : vector<1x128xi1> to vector<1x128xi32>
    %54 = arith.sitofp %53 : vector<1x128xi32> to vector<1x128xf32>
    %c5_8 = arith.constant 5 : index
    %c1 = arith.constant 1 : index
    %55 = vector.load %arg0[%c5_8, %c1] : memref<8x8xf32, #tpu.memory_space<vmem>>, vector<3x1xf32>
    %56 = vector.broadcast %55 : vector<3x1xf32> to vector<3x128xf32>
    %57 = vector.broadcast %54 : vector<1x128xf32> to vector<3x128xf32>
    %58 = arith.mulf %56, %57 : vector<3x128xf32>
    %59 = vector.extract_strided_slice %0 {offsets = [0, 0], sizes = [5, 1], strides = [1, 1]} : vector<5x3xf32> to vector<5x1xf32>
    %60 = vector.extract_strided_slice %58 {offsets = [0, 0], sizes = [1, 128], strides = [1, 1]} : vector<3x128xf32> to vector<1x128xf32>
    %61 = vector.broadcast %59 : vector<5x1xf32> to vector<5x128xf32>
    %62 = vector.broadcast %60 : vector<1x128xf32> to vector<5x128xf32>
    %63 = arith.mulf %61, %62 : vector<5x128xf32>
    %64 = arith.addf %50, %63 : vector<5x128xf32>
    %65 = vector.extract_strided_slice %0 {offsets = [0, 1], sizes = [5, 1], strides = [1, 1]} : vector<5x3xf32> to vector<5x1xf32>
    %66 = vector.extract_strided_slice %58 {offsets = [1, 0], sizes = [1, 128], strides = [1, 1]} : vector<3x128xf32> to vector<1x128xf32>
    %67 = vector.broadcast %65 : vector<5x1xf32> to vector<5x128xf32>
    %68 = vector.broadcast %66 : vector<1x128xf32> to vector<5x128xf32>
    %69 = arith.mulf %67, %68 : vector<5x128xf32>
    %70 = arith.addf %64, %69 : vector<5x128xf32>
    %71 = vector.extract_strided_slice %0 {offsets = [0, 2], sizes = [5, 1], strides = [1, 1]} : vector<5x3xf32> to vector<5x1xf32>
    %72 = vector.extract_strided_slice %58 {offsets = [2, 0], sizes = [1, 128], strides = [1, 1]} : vector<3x128xf32> to vector<1x128xf32>
    %73 = vector.broadcast %71 : vector<5x1xf32> to vector<5x128xf32>
    %74 = vector.broadcast %72 : vector<1x128xf32> to vector<5x128xf32>
    %75 = arith.mulf %73, %74 : vector<5x128xf32>
    %76 = arith.addf %70, %75 : vector<5x128xf32>
    %77 = vector.extract_strided_slice %1 {offsets = [0, 0], sizes = [5, 1], strides = [1, 1]} : vector<5x3xf32> to vector<5x1xf32>
    %cst_9 = arith.constant 1.000000e-01 : f32
    %78 = vector.broadcast %cst_9 : f32 to vector<5x1xf32>
    %79 = arith.mulf %78, %77 : vector<5x1xf32>
    %cst_10 = arith.constant 0.000000e+00 : f32
    %80 = vector.broadcast %cst_10 : f32 to vector<5x1xf32>
    %81 = arith.addf %80, %79 : vector<5x1xf32>
    %82 = vector.extract_strided_slice %1 {offsets = [0, 1], sizes = [5, 1], strides = [1, 1]} : vector<5x3xf32> to vector<5x1xf32>
    %cst_11 = arith.constant -1.000000e-01 : f32
    %83 = vector.broadcast %cst_11 : f32 to vector<5x1xf32>
    %84 = arith.mulf %83, %82 : vector<5x1xf32>
    %85 = arith.addf %81, %84 : vector<5x1xf32>
    %86 = vector.extract_strided_slice %1 {offsets = [0, 2], sizes = [5, 1], strides = [1, 1]} : vector<5x3xf32> to vector<5x1xf32>
    %cst_12 = arith.constant -1.000000e-01 : f32
    %87 = vector.broadcast %cst_12 : f32 to vector<5x1xf32>
    %88 = arith.mulf %87, %86 : vector<5x1xf32>
    %89 = arith.addf %85, %88 : vector<5x1xf32>
    %90 = vector.broadcast %89 : vector<5x1xf32> to vector<5x128xf32>
    %91 = vector.broadcast %54 : vector<1x128xf32> to vector<5x128xf32>
    %92 = arith.mulf %90, %91 : vector<5x128xf32>
    %93 = arith.addf %76, %92 : vector<5x128xf32>
    %c10_i32 = arith.constant 10 : i32
    %94 = vector.broadcast %c10_i32 : i32 to vector<1x128xi32>
    %95 = arith.cmpi eq, %5, %94 : vector<1x128xi32>
    %96 = arith.extui %95 : vector<1x128xi1> to vector<1x128xi32>
    %97 = arith.sitofp %96 : vector<1x128xi32> to vector<1x128xf32>
    %c5_13 = arith.constant 5 : index
    %c2 = arith.constant 2 : index
    %98 = vector.load %arg0[%c5_13, %c2] : memref<8x8xf32, #tpu.memory_space<vmem>>, vector<3x1xf32>
    %99 = vector.broadcast %98 : vector<3x1xf32> to vector<3x128xf32>
    %100 = vector.broadcast %97 : vector<1x128xf32> to vector<3x128xf32>
    %101 = arith.mulf %99, %100 : vector<3x128xf32>
    %102 = vector.extract_strided_slice %0 {offsets = [0, 0], sizes = [5, 1], strides = [1, 1]} : vector<5x3xf32> to vector<5x1xf32>
    %103 = vector.extract_strided_slice %101 {offsets = [0, 0], sizes = [1, 128], strides = [1, 1]} : vector<3x128xf32> to vector<1x128xf32>
    %104 = vector.broadcast %102 : vector<5x1xf32> to vector<5x128xf32>
    %105 = vector.broadcast %103 : vector<1x128xf32> to vector<5x128xf32>
    %106 = arith.mulf %104, %105 : vector<5x128xf32>
    %107 = arith.addf %93, %106 : vector<5x128xf32>
    %108 = vector.extract_strided_slice %0 {offsets = [0, 1], sizes = [5, 1], strides = [1, 1]} : vector<5x3xf32> to vector<5x1xf32>
    %109 = vector.extract_strided_slice %101 {offsets = [1, 0], sizes = [1, 128], strides = [1, 1]} : vector<3x128xf32> to vector<1x128xf32>
    %110 = vector.broadcast %108 : vector<5x1xf32> to vector<5x128xf32>
    %111 = vector.broadcast %109 : vector<1x128xf32> to vector<5x128xf32>
    %112 = arith.mulf %110, %111 : vector<5x128xf32>
    %113 = arith.addf %107, %112 : vector<5x128xf32>
    %114 = vector.extract_strided_slice %0 {offsets = [0, 2], sizes = [5, 1], strides = [1, 1]} : vector<5x3xf32> to vector<5x1xf32>
    %115 = vector.extract_strided_slice %101 {offsets = [2, 0], sizes = [1, 128], strides = [1, 1]} : vector<3x128xf32> to vector<1x128xf32>
    %116 = vector.broadcast %114 : vector<5x1xf32> to vector<5x128xf32>
    %117 = vector.broadcast %115 : vector<1x128xf32> to vector<5x128xf32>
    %118 = arith.mulf %116, %117 : vector<5x128xf32>
    %119 = arith.addf %113, %118 : vector<5x128xf32>
    %120 = vector.extract_strided_slice %1 {offsets = [0, 0], sizes = [5, 1], strides = [1, 1]} : vector<5x3xf32> to vector<5x1xf32>
    %cst_14 = arith.constant 1.000000e-01 : f32
    %121 = vector.broadcast %cst_14 : f32 to vector<5x1xf32>
    %122 = arith.mulf %121, %120 : vector<5x1xf32>
    %cst_15 = arith.constant 0.000000e+00 : f32
    %123 = vector.broadcast %cst_15 : f32 to vector<5x1xf32>
    %124 = arith.addf %123, %122 : vector<5x1xf32>
    %125 = vector.extract_strided_slice %1 {offsets = [0, 1], sizes = [5, 1], strides = [1, 1]} : vector<5x3xf32> to vector<5x1xf32>
    %cst_16 = arith.constant -1.000000e-01 : f32
    %126 = vector.broadcast %cst_16 : f32 to vector<5x1xf32>
    %127 = arith.mulf %126, %125 : vector<5x1xf32>
    %128 = arith.addf %124, %127 : vector<5x1xf32>
    %129 = vector.extract_strided_slice %1 {offsets = [0, 2], sizes = [5, 1], strides = [1, 1]} : vector<5x3xf32> to vector<5x1xf32>
    %cst_17 = arith.constant -1.000000e-01 : f32
    %130 = vector.broadcast %cst_17 : f32 to vector<5x1xf32>
    %131 = arith.mulf %130, %129 : vector<5x1xf32>
    %132 = arith.addf %128, %131 : vector<5x1xf32>
    %133 = vector.broadcast %132 : vector<5x1xf32> to vector<5x128xf32>
    %134 = vector.broadcast %97 : vector<1x128xf32> to vector<5x128xf32>
    %135 = arith.mulf %133, %134 : vector<5x128xf32>
    %136 = arith.addf %119, %135 : vector<5x128xf32>
    %c0_18 = arith.constant 0 : index
    %c0_19 = arith.constant 0 : index
    %137 = vector.load %arg1[%c0_18, %c0_19] : memref<5x128xf32, #tpu.memory_space<vmem>>, vector<5x128xf32>
    tpu.vector_store %arg1[%c0_18, %c0_19], %136 {strides = array<i32>} : memref<5x128xf32, #tpu.memory_space<vmem>>, vector<5x128xf32>,
    return
  }
}

</mosaic_0001>

<llo_original>
// kernel: model_forward.1
$region0: #{model_forward.1}
  #allocation0 [shape = 'u32[]', space=smem, size = 0x4, offset = 0x4, fixed_abs, tag = 'smem constant byte address 0x4 - core index']
  #allocation1 [shape = 'u32[72,128]{1,0:T(1,128)}', space=vmem, size = 0x9000, scoped, tag = 'internal scratch']
  %s0 = inlined_call_operand.vmem [shape: f32[8,8], index: 0, kind: input, shape index: {}]
  %s1 = inlined_call_operand.vmem [shape: f32[5,128], index: 1, kind: output, shape index: {}]
  %s2 = sld [smem:[#allocation0]]
  $region14: #{model_forward.1} parent=0
    _
  %s4 = ssub.s32 1, %s2
  %s5 = scalar_select 0, %s4, %s2
  // Predicated region
  $region2: #{model_forward.1} parent=0 // pred_check
    _
  $region3: #{model_forward.1} parent=0 // pred_check_branch
    %7 = sbr.rel (0) target = $region5
  $region4: #{model_forward.1} parent=0 // pred_region
    _
  $region5: #{model_forward.1} parent=0 // pred_fallthru
    _
  %v8 = vld [vmem:[%s0] sm:$0x1f]
  %10 = vrot.lane.b32.xlu0 %v8, 127
  %v11 = vpop.permute.xlu0 %10
  %v13 = vadd.f32 %v8, %v11
  %v14 = vlaneseq
  %v15 = vand.u32 %v14, 127
  %17 = vset.pattern.permute.xlu0 6
  %18 = vperm.xlu0 %17, %v13
  %v19 = vpop.permute.xlu0 %18
  %vm21 = vcmp.eq.s32.totalorder %v15, 4
  %v22 = vsel %vm21, 1, 0
  %v23 = vcvt.s32.f32 %v22
  %v24 = vld [vmem:[%s0 + $0x5] sm:$0x7]
  %26 = vset.pattern.permute.xlu0 0
  %27 = vperm.xlu0 %26, %v24
  %v28 = vpop.permute.xlu0 %27
  %v30 = vmul.f32 %v28, %v23
  %31 = vset.pattern.permute.xlu0 0
  %32 = vperm.xlu0 %31, %v8
  %v33 = vpop.permute.xlu0 %32
  %v35 = vperm.slane %v30, 0
  %v36 = vmul.f32 %v33, %v35
  %v37 = vadd.f32 %v19, %v36
  %38 = vset.pattern.permute.xlu0 1
  %39 = vperm.xlu0 %38, %v8
  %v40 = vpop.permute.xlu0 %39
  %v42 = vperm.slane %v30, 1
  %v43 = vmul.f32 %v40, %v42
  %v44 = vadd.f32 %v37, %v43
  %45 = vset.pattern.permute.xlu0 2
  %46 = vperm.xlu0 %45, %v8
  %v47 = vpop.permute.xlu0 %46
  %v49 = vperm.slane %v30, 2
  %v50 = vmul.f32 %v47, %v49
  %v51 = vadd.f32 %v44, %v50
  %v52 = vmul.f32 %v8, 0.1
  %v53 = vadd.f32 %v52, 0.0
  %v54 = vmul.f32 %v8, -0.1
  %56 = vrot.lane.b32.xlu0 %v54, 127
  %v57 = vpop.permute.xlu0 %56
  %v59 = vadd.f32 %v53, %v57
  %60 = vrot.lane.b32.xlu0 %v54, 126
  %v61 = vpop.permute.xlu0 %60
  %v63 = vadd.f32 %v59, %v61
  %65 = vset.pattern.permute.xlu0 3
  %66 = vperm.xlu0 %65, %v63
  %v67 = vpop.permute.xlu0 %66
  %v69 = vmul.f32 %v67, %v23
  %v70 = vadd.f32 %v51, %v69
  %vm71 = vcmp.eq.s32.totalorder %v15, 7
  %v72 = vsel %vm71, 1, 0
  %v73 = vcvt.s32.f32 %v72
  %74 = vset.pattern.permute.xlu0 1
  %75 = vperm.xlu0 %74, %v24
  %v76 = vpop.permute.xlu0 %75
  %v78 = vmul.f32 %v76, %v73
  %v79 = vperm.slane %v78, 0
  %v80 = vmul.f32 %v33, %v79
  %v81 = vadd.f32 %v70, %v80
  %v82 = vperm.slane %v78, 1
  %v83 = vmul.f32 %v40, %v82
  %v84 = vadd.f32 %v81, %v83
  %v85 = vperm.slane %v78, 2
  %v86 = vmul.f32 %v47, %v85
  %v87 = vadd.f32 %v84, %v86
  %v88 = vmul.f32 %v67, %v73
  %v89 = vadd.f32 %v87, %v88
  %vm90 = vcmp.eq.s32.totalorder %v15, 10
  %v91 = vsel %vm90, 1, 0
  %v92 = vcvt.s32.f32 %v91
  %93 = vset.pattern.permute.xlu0 2
  %94 = vperm.xlu0 %93, %v24
  %v95 = vpop.permute.xlu0 %94
  %v97 = vmul.f32 %v95, %v92
  %v98 = vperm.slane %v97, 0
  %v99 = vmul.f32 %v33, %v98
  %v100 = vadd.f32 %v89, %v99
  %v101 = vperm.slane %v97, 1
  %v102 = vmul.f32 %v40, %v101
  %v103 = vadd.f32 %v100, %v102
  %v104 = vperm.slane %v97, 2
  %v105 = vmul.f32 %v47, %v104
  %v106 = vadd.f32 %v103, %v105
  %v107 = vmul.f32 %v67, %v92
  %v108 = vadd.f32 %v106, %v107
  %109 = vst [vmem:[%s1] sm:$0x1f] %v108
  // Predicated region
  $region6: #{model_forward.1} parent=0 // pred_check
    _
  $region7: #{model_forward.1} parent=0 // pred_check_branch
    %111 = sbr.rel (0) target = $region9
  $region8: #{model_forward.1} parent=0 // pred_region
    _
  $region9: #{model_forward.1} parent=0 // pred_fallthru
    _
  // Predicated region
  $region10: #{model_forward.1} parent=0 // pred_check
    _
  $region11: #{model_forward.1} parent=0 // pred_check_branch
    %113 = sbr.rel (0) target = $region13
  $region12: #{model_forward.1} parent=0 // pred_region
    _
  $region13: #{model_forward.1} parent=0 // pred_fallthru
    _

</llo_original>
